<compile_context>
chip_gen: v6e
topology: v6e:2x2x1
jax: 0.10.0
libtpu: 0.0.40
codegen_flags: <defaults>
</compile_context>

<pallas_src>
import functools

import jax
import jax.numpy as jnp
from jax.experimental import pallas as pl
from jax.experimental.pallas import tpu as pltpu

LAYER_SIZE = 320   # out_feature of the encoder in the reference module
C_PAD = 8          # zero-padded channel count so layer 1 is a plain MXU dot


# ----------------------------------------------------------------------------
# Encoder kernel: shared-MLP + per-cloud global max-pool + feature head.
# One grid step processes `clouds_per_block` whole clouds (pool is block-local).
# ----------------------------------------------------------------------------
def _encoder_kernel(pts_ref, w1_ref, b1_ref, w2_ref, b2_ref, w3_ref, b3_ref,
                    feat_ref, *, clouds_per_block, n_points):
    # Layer 1 on the MXU: [rows, 8] @ [8, H1], bf16 operands, f32 accumulate.
    h = jnp.dot(pts_ref[...], w1_ref[...],
                preferred_element_type=jnp.float32) + b1_ref[...]
    h = jnp.maximum(h, 0.0)                                   # [rows, H1] f32

    # Layer 2: [rows, H1] @ [H1, H2].
    h = jnp.dot(h.astype(jnp.bfloat16), w2_ref[...],
                preferred_element_type=jnp.float32) + b2_ref[...]
    h = jnp.maximum(h, 0.0)                                   # [rows, H2] f32

    # Per-cloud global max-pool.  n_points % 8 == 0 (checked in the wrapper),
    # so the reshape is a free view (no (8,128)-tile crossing).
    pooled = jnp.max(h.reshape(clouds_per_block, n_points, h.shape[-1]),
                     axis=1)                                  # [cpb, H2] f32

    # Feature head: [cpb, H2] @ [H2, D].
    feat = jnp.dot(pooled.astype(jnp.bfloat16), w3_ref[...],
                   preferred_element_type=jnp.float32) + b3_ref[...]
    feat_ref[...] = feat[None, :, :]                          # [1, cpb, D]


# ----------------------------------------------------------------------------
# Matching head: L2-normalize SUPPORT features only (matches
# F.normalize(refined_support, dim=2) in the reference), dot against query
# features, scale by 1/temperature.
# ----------------------------------------------------------------------------
def _match_head_kernel(feat_ref, out_ref, *, num_support, inv_temperature):
    feat = feat_ref[...]                                      # [B, D] f32
    sup = feat[:num_support]                                  # [Ns, D]
    qry = feat[num_support:]                                  # [Nq, D]

    # F.normalize(eps=1e-12): x / max(||x||, eps) == x * rsqrt(max(||x||^2, 1e-24))
    sq = jnp.sum(sup * sup, axis=1, keepdims=True)
    s_n = sup * jax.lax.rsqrt(jnp.maximum(sq, 1e-24))

    # logits[q, s] = <normalize(support[s]), query[q]>
    logits = jax.lax.dot_general(
        qry.astype(jnp.bfloat16), s_n.astype(jnp.bfloat16),
        (((1,), (1,)), ((), ())),
        preferred_element_type=jnp.float32)                   # [Nq, Ns]
    out_ref[...] = logits * inv_temperature


def _pick_clouds_per_block(n_clouds, n_points, target_rows=512):
    """Largest divisor of n_clouds whose block has <= target_rows rows."""
    best = 1
    for c in range(1, n_clouds + 1):
        if n_clouds % c == 0 and c * n_points <= target_rows:
            best = c
    return best


# ----------------------------------------------------------------------------
# MatchNet3D forward (use_bilstm=False path)
# ----------------------------------------------------------------------------
def matchnet3d_forward(params, support_set, query_set, args):
    w1, b1, w2, b2, w3, b3 = params
    num_support, n_points, n_ch = support_set.shape
    num_query = query_set.shape[0]
    n_clouds = num_support + num_query
    H1, H2, D = w1.shape[1], w2.shape[1], w3.shape[1]

    assert n_ch <= C_PAD
    # In-kernel max-pool reshape is only a free view if n_points % 8 == 0.
    assert n_points % 8 == 0, "n_points must be a multiple of 8"

    # Wrapper-side layout prep (plain XLA):
    #  * channels-last points, zero-padded 3 -> 8 so layer 1 is an MXU dot
    #    (kills the lane-sparse [B*N,3] layout and its XLU broadcasts)
    #  * weights pre-cast to bf16 (halves weight DMA; MXU-native operand type)
    pts = jnp.concatenate([support_set, query_set], axis=0)   # [B, N, 3]
    pts = pts.reshape(n_clouds * n_points, n_ch)
    pts_pad = jnp.pad(pts, ((0, 0), (0, C_PAD - n_ch))).astype(jnp.bfloat16)
    w1_pad = jnp.pad(w1, ((0, C_PAD - n_ch), (0, 0))).astype(jnp.bfloat16)
    w2_b = w2.astype(jnp.bfloat16)
    w3_b = w3.astype(jnp.bfloat16)
    b1_f = b1.astype(jnp.float32)
    b2_f = b2.astype(jnp.float32)
    b3_f = b3.astype(jnp.float32)

    cpb = _pick_clouds_per_block(n_clouds, n_points)
    num_blocks = n_clouds // cpb
    rows = n_clouds * n_points

    enc_flops = 2 * rows * (C_PAD * H1 + H1 * H2) + 2 * n_clouds * H2 * D
    enc_bytes = (pts_pad.size * 2
                 + (w1_pad.size + w2_b.size + w3_b.size) * 2
                 + (b1_f.size + b2_f.size + b3_f.size) * 4
                 + n_clouds * D * 4)

    feats = pl.pallas_call(
        functools.partial(_encoder_kernel, clouds_per_block=cpb,
                          n_points=n_points),
        out_shape=jax.ShapeDtypeStruct((num_blocks, cpb, D), jnp.float32),
        grid=(num_blocks,),
        in_specs=[
            pl.BlockSpec((cpb * n_points, C_PAD), lambda i: (i, 0)),
            pl.BlockSpec((C_PAD, H1), lambda i: (0, 0)),
            pl.BlockSpec((1, H1), lambda i: (0, 0)),
            pl.BlockSpec((H1, H2), lambda i: (0, 0)),
            pl.BlockSpec((1, H2), lambda i: (0, 0)),
            pl.BlockSpec((H2, D), lambda i: (0, 0)),
            pl.BlockSpec((1, D), lambda i: (0, 0)),
        ],
        out_specs=pl.BlockSpec((1, cpb, D), lambda i: (i, 0, 0)),
        compiler_params=pltpu.CompilerParams(
            dimension_semantics=("parallel",),
            vmem_limit_bytes=64 * 1024 * 1024),
        cost_estimate=pl.CostEstimate(flops=int(enc_flops), transcendentals=0,
                                      bytes_accessed=int(enc_bytes)),
    )(pts_pad, w1_pad, b1_f, w2_b, b2_f, w3_b, b3_f)

    feats = feats.reshape(n_clouds, D)                        # [B, 320] f32

    head_flops = 2 * num_query * num_support * D + 3 * num_support * D
    head_bytes = (n_clouds * D + num_query * num_support) * 4

    logits = pl.pallas_call(
        functools.partial(_match_head_kernel, num_support=num_support,
                          inv_temperature=1.0 / float(args.temperature)),
        out_shape=jax.ShapeDtypeStruct((num_query, num_support), jnp.float32),
        grid=(1,),
        in_specs=[pl.BlockSpec((n_clouds, D), lambda i: (0, 0))],
        out_specs=pl.BlockSpec((num_query, num_support), lambda i: (0, 0)),
        compiler_params=pltpu.CompilerParams(
            dimension_semantics=("arbitrary",)),
        cost_estimate=pl.CostEstimate(flops=int(head_flops),
                                      transcendentals=int(num_support),
                                      bytes_accessed=int(head_bytes)),
    )(feats)

    # Same shape/semantics as torch.bmm(refined_support, refined_query^T) / T:
    # [num_query, num_support, 1]
    return logits[:, :, None]


class Args:
    pass


if __name__ == "__main__":
    way, shot, query = 5, 1, 3
    n_points = 64
    num_support = way * shot          # 5
    num_query = way * query           # 15

    key = jax.random.PRNGKey(0)
    k_sup, k_qry, k_w1, k_w2, k_w3 = jax.random.split(key, 5)

    support_set = jax.random.normal(k_sup, (num_support, n_points, 3), jnp.float32)
    query_set = jax.random.normal(k_qry, (num_query, n_points, 3), jnp.float32)

    H1, H2 = 64, 128
    params = (
        0.1 * jax.random.normal(k_w1, (3, H1), jnp.float32),
        jnp.zeros((1, H1), jnp.float32),
        0.1 * jax.random.normal(k_w2, (H1, H2), jnp.float32),
        jnp.zeros((1, H2), jnp.float32),
        0.1 * jax.random.normal(k_w3, (H2, LAYER_SIZE), jnp.float32),
        jnp.zeros((1, LAYER_SIZE), jnp.float32),
    )

    args = Args()
    args.way, args.shot, args.query = way, shot, query
    args.temperature = 16.0
    args.use_bilstm = False

    logits = matchnet3d_forward(params, support_set, query_set, args)
    logits = jax.block_until_ready(logits)
    assert logits.shape == (num_query, num_support, 1), logits.shape
    assert bool(jnp.all(jnp.isfinite(logits)))
    print("KERNEL_OK")
</pallas_src>

<mosaic_0001>
module attributes {stable_mosaic.version = 11 : i64} {
  func.func @_encoder_kernel(%arg0: i32, %arg1: memref<320x8xbf16, #tpu.memory_space<vmem>>, %arg2: memref<8x64xbf16, #tpu.memory_space<vmem>>, %arg3: memref<1x64xf32, #tpu.memory_space<vmem>>, %arg4: memref<64x128xbf16, #tpu.memory_space<vmem>>, %arg5: memref<1x128xf32, #tpu.memory_space<vmem>>, %arg6: memref<128x320xbf16, #tpu.memory_space<vmem>>, %arg7: memref<1x320xf32, #tpu.memory_space<vmem>>, %arg8: memref<1x5x320xf32, #tpu.memory_space<vmem>>) attributes {dimension_semantics = [#tpu.dimension_semantics<parallel>], iteration_bounds = array<i64: 4>, scalar_prefetch = 0 : i64, scratch_operands = 0 : i64, tpu.core_type = #tpu.core_type<tc>, window_params = [{transform_indices = @transform_0, window_bounds = array<i64: 320, 8>}, {pipeline_mode = #tpu.pipeline_mode<synchronous>, transform_indices = @transform_1, window_bounds = array<i64: 8, 64>}, {pipeline_mode = #tpu.pipeline_mode<synchronous>, transform_indices = @transform_2, window_bounds = array<i64: 1, 64>}, {pipeline_mode = #tpu.pipeline_mode<synchronous>, transform_indices = @transform_3, window_bounds = array<i64: 64, 128>}, {pipeline_mode = #tpu.pipeline_mode<synchronous>, transform_indices = @transform_4, window_bounds = array<i64: 1, 128>}, {pipeline_mode = #tpu.pipeline_mode<synchronous>, transform_indices = @transform_5, window_bounds = array<i64: 128, 320>}, {pipeline_mode = #tpu.pipeline_mode<synchronous>, transform_indices = @transform_6, window_bounds = array<i64: 1, 320>}, {transform_indices = @transform_7, window_bounds = array<i64: 1, 5, 320>}]} {
    %c0 = arith.constant 0 : index
    %c0_0 = arith.constant 0 : index
    %0 = vector.load %arg1[%c0, %c0_0] : memref<320x8xbf16, #tpu.memory_space<vmem>>, vector<320x8xbf16>
    %c0_1 = arith.constant 0 : index
    %c0_2 = arith.constant 0 : index
    %1 = vector.load %arg2[%c0_1, %c0_2] : memref<8x64xbf16, #tpu.memory_space<vmem>>, vector<8x64xbf16>
    %cst = arith.constant dense<0.000000e+00> : vector<320x64xf32>
    %2 = tpu.matmul %0, %1, %cst {dimension_numbers = #tpu.dot_dimension_numbers<[1], [0], [0], [1], [0, 0, 1, 1], [], []>} : vector<320x8xbf16>, vector<8x64xbf16>, vector<320x64xf32> -> vector<320x64xf32>
    %c0_3 = arith.constant 0 : index
    %c0_4 = arith.constant 0 : index
    %3 = vector.load %arg3[%c0_3, %c0_4] : memref<1x64xf32, #tpu.memory_space<vmem>>, vector<1x64xf32>
    %4 = vector.broadcast %3 : vector<1x64xf32> to vector<320x64xf32>
    %5 = arith.addf %2, %4 : vector<320x64xf32>
    %cst_5 = arith.constant 0.000000e+00 : f32
    %6 = vector.broadcast %cst_5 : f32 to vector<320x64xf32>
    %7 = arith.maximumf %5, %6 : vector<320x64xf32>
    %8 = arith.truncf %7 : vector<320x64xf32> to vector<320x64xbf16>
    %c0_6 = arith.constant 0 : index
    %c0_7 = arith.constant 0 : index
    %9 = vector.load %arg4[%c0_6, %c0_7] : memref<64x128xbf16, #tpu.memory_space<vmem>>, vector<64x128xbf16>
    %cst_8 = arith.constant dense<0.000000e+00> : vector<320x128xf32>
    %10 = tpu.matmul %8, %9, %cst_8 {dimension_numbers = #tpu.dot_dimension_numbers<[1], [0], [0], [1], [0, 0, 1, 1], [], []>} : vector<320x64xbf16>, vector<64x128xbf16>, vector<320x128xf32> -> vector<320x128xf32>
    %c0_9 = arith.constant 0 : index
    %c0_10 = arith.constant 0 : index
    %11 = vector.load %arg5[%c0_9, %c0_10] : memref<1x128xf32, #tpu.memory_space<vmem>>, vector<1x128xf32>
    %12 = vector.broadcast %11 : vector<1x128xf32> to vector<320x128xf32>
    %13 = arith.addf %10, %12 : vector<320x128xf32>
    %cst_11 = arith.constant 0.000000e+00 : f32
    %14 = vector.broadcast %cst_11 : f32 to vector<320x128xf32>
    %15 = arith.maximumf %13, %14 : vector<320x128xf32>
    %16 = vector.shape_cast %15 : vector<320x128xf32> to vector<5x64x128xf32>
    %cst_12 = arith.constant dense<0xFF800000> : vector<5x128xf32>
    %17 = vector.multi_reduction <maximumf>, %16, %cst_12 [1] : vector<5x64x128xf32> to vector<5x128xf32>
    %18 = arith.truncf %17 : vector<5x128xf32> to vector<5x128xbf16>
    %c0_13 = arith.constant 0 : index
    %c0_14 = arith.constant 0 : index
    %19 = vector.load %arg6[%c0_13, %c0_14] : memref<128x320xbf16, #tpu.memory_space<vmem>>, vector<128x320xbf16>
    %cst_15 = arith.constant dense<0.000000e+00> : vector<5x320xf32>
    %20 = tpu.matmul %18, %19, %cst_15 {dimension_numbers = #tpu.dot_dimension_numbers<[1], [0], [0], [1], [0, 0, 1, 1], [], []>} : vector<5x128xbf16>, vector<128x320xbf16>, vector<5x320xf32> -> vector<5x320xf32>
    %c0_16 = arith.constant 0 : index
    %c0_17 = arith.constant 0 : index
    %21 = vector.load %arg7[%c0_16, %c0_17] : memref<1x320xf32, #tpu.memory_space<vmem>>, vector<1x320xf32>
    %22 = vector.broadcast %21 : vector<1x320xf32> to vector<5x320xf32>
    %23 = arith.addf %20, %22 : vector<5x320xf32>
    %24 = vector.shape_cast %23 : vector<5x320xf32> to vector<1x5x320xf32>
    %c0_18 = arith.constant 0 : index
    %c0_19 = arith.constant 0 : index
    %c0_20 = arith.constant 0 : index
    %25 = vector.load %arg8[%c0_18, %c0_19, %c0_20] : memref<1x5x320xf32, #tpu.memory_space<vmem>>, vector<1x5x320xf32>
    tpu.vector_store %arg8[%c0_18, %c0_19, %c0_20], %24 {strides = array<i32>} : memref<1x5x320xf32, #tpu.memory_space<vmem>>, vector<1x5x320xf32>,
    return
  }
  func.func @transform_0(%arg0: i32) -> (i32, i32) {
    %c0_i32 = arith.constant 0 : i32
    %c0_i32_0 = arith.constant 0 : i32
    return %arg0, %c0_i32 : i32, i32
  }
  func.func @transform_1(%arg0: i32) -> (i32, i32) {
    %c0_i32 = arith.constant 0 : i32
    %c0_i32_0 = arith.constant 0 : i32
    %c0_i32_1 = arith.constant 0 : i32
    return %c0_i32, %c0_i32_0 : i32, i32
  }
  func.func @transform_2(%arg0: i32) -> (i32, i32) {
    %c0_i32 = arith.constant 0 : i32
    %c0_i32_0 = arith.constant 0 : i32
    %c0_i32_1 = arith.constant 0 : i32
    return %c0_i32, %c0_i32_0 : i32, i32
  }
  func.func @transform_3(%arg0: i32) -> (i32, i32) {
    %c0_i32 = arith.constant 0 : i32
    %c0_i32_0 = arith.constant 0 : i32
    %c0_i32_1 = arith.constant 0 : i32
    return %c0_i32, %c0_i32_0 : i32, i32
  }
  func.func @transform_4(%arg0: i32) -> (i32, i32) {
    %c0_i32 = arith.constant 0 : i32
    %c0_i32_0 = arith.constant 0 : i32
    %c0_i32_1 = arith.constant 0 : i32
    return %c0_i32, %c0_i32_0 : i32, i32
  }
  func.func @transform_5(%arg0: i32) -> (i32, i32) {
    %c0_i32 = arith.constant 0 : i32
    %c0_i32_0 = arith.constant 0 : i32
    %c0_i32_1 = arith.constant 0 : i32
    return %c0_i32, %c0_i32_0 : i32, i32
  }
  func.func @transform_6(%arg0: i32) -> (i32, i32) {
    %c0_i32 = arith.constant 0 : i32
    %c0_i32_0 = arith.constant 0 : i32
    %c0_i32_1 = arith.constant 0 : i32
    return %c0_i32, %c0_i32_0 : i32, i32
  }
  func.func @transform_7(%arg0: i32) -> (i32, i32, i32) {
    %c0_i32 = arith.constant 0 : i32
    %c0_i32_0 = arith.constant 0 : i32
    %c0_i32_1 = arith.constant 0 : i32
    return %arg0, %c0_i32, %c0_i32_0 : i32, i32, i32
  }
}

</mosaic_0001>

<llo_original>
// kernel: tpu_custom_call.1
$region0: #{tpu_custom_call.1}
  #allocation0 [shape = 'u32[]', space=smem, size = 0x4, offset = 0x4, fixed_abs, tag = 'smem constant byte address 0x4 - core index']
  #allocation1 [shape = 'u32[144,128]{1,0:T(1,128)}', space=vmem, size = 0x12000, scoped, tag = 'internal scratch']
  %s0 = inlined_call_operand.vmem [shape: bf16[1280,8], index: 0, kind: input, shape index: {}]
  %s1 = inlined_call_operand.vmem [shape: bf16[8,64], index: 1, kind: input, shape index: {}]
  %s2 = inlined_call_operand.vmem [shape: f32[1,64], index: 2, kind: input, shape index: {}]
  %s3 = inlined_call_operand.vmem [shape: bf16[64,128], index: 3, kind: input, shape index: {}]
  %s4 = inlined_call_operand.vmem [shape: f32[1,128], index: 4, kind: input, shape index: {}]
  %s5 = inlined_call_operand.vmem [shape: bf16[128,320], index: 5, kind: input, shape index: {}]
  %s6 = inlined_call_operand.vmem [shape: f32[1,320], index: 6, kind: input, shape index: {}]
  %s7 = inlined_call_operand.vmem [shape: f32[4,5,320], index: 7, kind: output, shape index: {}]
  %s8 = sld [smem:[#allocation0]]
  $region61: #{tpu_custom_call.1} parent=0
    _
  %s10 = ssub.s32 1, %s8
  %s11 = scalar_select 0, %s10, %s8
  loop: start=0, step=1, limit=6
  $region2: #{tpu_custom_call.1} parent=0 // loop_pre_header
    _
  $region3: #{tpu_custom_call.1} parent=0 // loop_header
    %s13 = sphi 0, %s17
    %p14 = scmp.ge.s32.totalorder %s13, 6
    %s23 = sphi 0, %s25
    %s26 = sphi 0, %s23
    %s27 = sphi 0, %s26
    %s43 = sphi 0, %s27
    %s47 = sphi 0, %s47
    %s49 = sphi 0, %s47
    %s50 = sphi 0, %s49
    %s64 = sphi 0, %s50
    %s68 = sphi 0, %s68
    %s70 = sphi 0, %s68
    %s71 = sphi 0, %s70
    %s85 = sphi 0, %s71
    %s89 = sphi 0, %s89
    %s91 = sphi 0, %s89
    %s92 = sphi 0, %s91
    %s106 = sphi 0, %s92
    %s110 = sphi 0, %s110
    %s112 = sphi 0, %s110
    %s113 = sphi 0, %s112
    %s127 = sphi 0, %s113
    %s131 = sphi 0, %s131
    %s133 = sphi 0, %s131
    %s134 = sphi 0, %s133
    %s148 = sphi 0, %s134
    %s152 = sphi 0, %s152
    %s154 = sphi 0, %s152
    %s155 = sphi 0, %s154
    %s169 = sphi 0, %s155
    %s175 = sphi 0, %s177
    %s178 = sphi 0, %s175
    %s179 = sphi 0, %s178
    %s195 = sphi 0, %s179
  $region4: #{tpu_custom_call.1} parent=0 // loop_header_branch
    %16 = sbr.rel (%p14) target = $region8
  $region5: #{tpu_custom_call.1} parent=0 // loop_body
    %s18 = ssub.s32 %s13, 1
    %s19 = ssub.s32 %s13, 2
    %s20 = sadd.s32 %s13, 1
    %s21 = ssub.s32 %s13, %s20
    %p22 = scmp.eq.s32.totalorder %s21, 0
    %s24 = sadd.s32 %s23, 1
    %s25 = scalar_select %p22, %s23, %s24
    %p28 = pneg %p22
    %p29 = scmp.eq.s32.totalorder %s13, 3
    %p30 = por %p28, %p29
    %p31 = scmp.ne.s32.totalorder %s23, %s26
    %p32 = scmp.eq.s32.totalorder %s13, 0
    %p33 = por %p31, %p32
    %p34 = scmp.ne.s32.totalorder %s23, %s26
    %p35 = scmp.eq.s32.totalorder %s18, 3
    %p36 = por %p34, %p35
    %p37 = scmp.ne.s32.totalorder %s26, %s27
    %p38 = scmp.eq.s32.totalorder %s18, 0
    %p39 = por %p37, %p38
    %p40 = scmp.ne.s32.totalorder %s26, %s27
    %p41 = scmp.eq.s32.totalorder %s19, 3
    %p42 = por %p40, %p41
    %p44 = scmp.ne.s32.totalorder %s27, %s43
    %p45 = scmp.eq.s32.totalorder %s19, 0
    %p46 = por %p44, %p45
    %s48 = sadd.s32 %s47, 1
    %p51 = scmp.eq.s32.totalorder %s13, 3
    %p52 = scmp.ne.s32.totalorder %s47, %s49
    %p53 = scmp.eq.s32.totalorder %s13, 0
    %p54 = por %p52, %p53
    %p55 = scmp.ne.s32.totalorder %s47, %s49
    %p56 = scmp.eq.s32.totalorder %s18, 3
    %p57 = por %p55, %p56
    %p58 = scmp.ne.s32.totalorder %s49, %s50
    %p59 = scmp.eq.s32.totalorder %s18, 0
    %p60 = por %p58, %p59
    %p61 = scmp.ne.s32.totalorder %s49, %s50
    %p62 = scmp.eq.s32.totalorder %s19, 3
    %p63 = por %p61, %p62
    %p65 = scmp.ne.s32.totalorder %s50, %s64
    %p66 = scmp.eq.s32.totalorder %s19, 0
    %p67 = por %p65, %p66
    %s69 = sadd.s32 %s68, 1
    %p72 = scmp.eq.s32.totalorder %s13, 3
    %p73 = scmp.ne.s32.totalorder %s68, %s70
    %p74 = scmp.eq.s32.totalorder %s13, 0
    %p75 = por %p73, %p74
    %p76 = scmp.ne.s32.totalorder %s68, %s70
    %p77 = scmp.eq.s32.totalorder %s18, 3
    %p78 = por %p76, %p77
    %p79 = scmp.ne.s32.totalorder %s70, %s71
    %p80 = scmp.eq.s32.totalorder %s18, 0
    %p81 = por %p79, %p80
    %p82 = scmp.ne.s32.totalorder %s70, %s71
    %p83 = scmp.eq.s32.totalorder %s19, 3
    %p84 = por %p82, %p83
    %p86 = scmp.ne.s32.totalorder %s71, %s85
    %p87 = scmp.eq.s32.totalorder %s19, 0
    %p88 = por %p86, %p87
    %s90 = sadd.s32 %s89, 1
    %p93 = scmp.eq.s32.totalorder %s13, 3
    %p94 = scmp.ne.s32.totalorder %s89, %s91
    %p95 = scmp.eq.s32.totalorder %s13, 0
    %p96 = por %p94, %p95
    %p97 = scmp.ne.s32.totalorder %s89, %s91
    %p98 = scmp.eq.s32.totalorder %s18, 3
    %p99 = por %p97, %p98
    %p100 = scmp.ne.s32.totalorder %s91, %s92
    %p101 = scmp.eq.s32.totalorder %s18, 0
    %p102 = por %p100, %p101
    %p103 = scmp.ne.s32.totalorder %s91, %s92
    %p104 = scmp.eq.s32.totalorder %s19, 3
    %p105 = por %p103, %p104
    %p107 = scmp.ne.s32.totalorder %s92, %s106
    %p108 = scmp.eq.s32.totalorder %s19, 0
    %p109 = por %p107, %p108
    %s111 = sadd.s32 %s110, 1
    %p114 = scmp.eq.s32.totalorder %s13, 3
    %p115 = scmp.ne.s32.totalorder %s110, %s112
    %p116 = scmp.eq.s32.totalorder %s13, 0
    %p117 = por %p115, %p116
    %p118 = scmp.ne.s32.totalorder %s110, %s112
    %p119 = scmp.eq.s32.totalorder %s18, 3
    %p120 = por %p118, %p119
    %p121 = scmp.ne.s32.totalorder %s112, %s113
    %p122 = scmp.eq.s32.totalorder %s18, 0
    %p123 = por %p121, %p122
    %p124 = scmp.ne.s32.totalorder %s112, %s113
    %p125 = scmp.eq.s32.totalorder %s19, 3
    %p126 = por %p124, %p125
    %p128 = scmp.ne.s32.totalorder %s113, %s127
    %p129 = scmp.eq.s32.totalorder %s19, 0
    %p130 = por %p128, %p129
    %s132 = sadd.s32 %s131, 1
    %p135 = scmp.eq.s32.totalorder %s13, 3
    %p136 = scmp.ne.s32.totalorder %s131, %s133
    %p137 = scmp.eq.s32.totalorder %s13, 0
    %p138 = por %p136, %p137
    %p139 = scmp.ne.s32.totalorder %s131, %s133
    %p140 = scmp.eq.s32.totalorder %s18, 3
    %p141 = por %p139, %p140
    %p142 = scmp.ne.s32.totalorder %s133, %s134
    %p143 = scmp.eq.s32.totalorder %s18, 0
    %p144 = por %p142, %p143
    %p145 = scmp.ne.s32.totalorder %s133, %s134
    %p146 = scmp.eq.s32.totalorder %s19, 3
    %p147 = por %p145, %p146
    %p149 = scmp.ne.s32.totalorder %s134, %s148
    %p150 = scmp.eq.s32.totalorder %s19, 0
    %p151 = por %p149, %p150
    %s153 = sadd.s32 %s152, 1
    %p156 = scmp.eq.s32.totalorder %s13, 3
    %p157 = scmp.ne.s32.totalorder %s152, %s154
    %p158 = scmp.eq.s32.totalorder %s13, 0
    %p159 = por %p157, %p158
    %p160 = scmp.ne.s32.totalorder %s152, %s154
    %p161 = scmp.eq.s32.totalorder %s18, 3
    %p162 = por %p160, %p161
    %p163 = scmp.ne.s32.totalorder %s154, %s155
    %p164 = scmp.eq.s32.totalorder %s18, 0
    %p165 = por %p163, %p164
    %p166 = scmp.ne.s32.totalorder %s154, %s155
    %p167 = scmp.eq.s32.totalorder %s19, 3
    %p168 = por %p166, %p167
    %p170 = scmp.ne.s32.totalorder %s155, %s169
    %p171 = scmp.eq.s32.totalorder %s19, 0
    %p172 = por %p170, %p171
    %s173 = ssub.s32 %s13, %s20
    %p174 = scmp.eq.s32.totalorder %s173, 0
    %s176 = sadd.s32 %s175, 1
    %s177 = scalar_select %p174, %s175, %s176
    %p180 = pneg %p174
    %p181 = scmp.eq.s32.totalorder %s13, 3
    %p182 = por %p180, %p181
    %p183 = scmp.ne.s32.totalorder %s175, %s178
    %p184 = scmp.eq.s32.totalorder %s13, 0
    %p185 = por %p183, %p184
    %p186 = scmp.ne.s32.totalorder %s175, %s178
    %p187 = scmp.eq.s32.totalorder %s18, 3
    %p188 = por %p186, %p187
    %p189 = scmp.ne.s32.totalorder %s178, %s179
    %p190 = scmp.eq.s32.totalorder %s18, 0
    %p191 = por %p189, %p190
    %p192 = scmp.ne.s32.totalorder %s178, %s179
    %p193 = scmp.eq.s32.totalorder %s19, 3
    %p194 = por %p192, %p193
    %p196 = scmp.ne.s32.totalorder %s179, %s195
    %p197 = scmp.eq.s32.totalorder %s19, 0
    %p198 = por %p196, %p197
    %p199 = scmp.le.s32.totalorder 1, %s13
    %p200 = scmp.lt.s32.totalorder %s13, 5
    %p201 = pnand %p199, %p200
    %p202 = pneg %p201
    // Predicated region
    $region9: #{tpu_custom_call.1} parent=5 // pred_check
      _
    $region10: #{tpu_custom_call.1} parent=5 // pred_check_branch
      %204 = sbr.rel (%p201) target = $region12
    $region11: #{tpu_custom_call.1} parent=5 // pred_region
      %s205 = ssub.s32 %s13, 1
      // Predicated region
      $region13: #{tpu_custom_call.1} parent=11 // pred_check
        %p206 = pneg %p60
      $region14: #{tpu_custom_call.1} parent=11 // pred_check_branch
        %208 = sbr.rel (%p206) target = $region16
      $region15: #{tpu_custom_call.1} parent=11 // pred_region
        _
      $region16: #{tpu_custom_call.1} parent=11 // pred_fallthru
        _
      // Predicated region
      $region17: #{tpu_custom_call.1} parent=11 // pred_check
        %p209 = pneg %p81
      $region18: #{tpu_custom_call.1} parent=11 // pred_check_branch
        %211 = sbr.rel (%p209) target = $region20
      $region19: #{tpu_custom_call.1} parent=11 // pred_region
        _
      $region20: #{tpu_custom_call.1} parent=11 // pred_fallthru
        _
      // Predicated region
      $region21: #{tpu_custom_call.1} parent=11 // pred_check
        %p212 = pneg %p102
      $region22: #{tpu_custom_call.1} parent=11 // pred_check_branch
        %214 = sbr.rel (%p212) target = $region24
      $region23: #{tpu_custom_call.1} parent=11 // pred_region
        _
      $region24: #{tpu_custom_call.1} parent=11 // pred_fallthru
        _
      // Predicated region
      $region25: #{tpu_custom_call.1} parent=11 // pred_check
        %p215 = pneg %p123
      $region26: #{tpu_custom_call.1} parent=11 // pred_check_branch
        %217 = sbr.rel (%p215) target = $region28
      $region27: #{tpu_custom_call.1} parent=11 // pred_region
        _
      $region28: #{tpu_custom_call.1} parent=11 // pred_fallthru
        _
      // Predicated region
      $region29: #{tpu_custom_call.1} parent=11 // pred_check
        %p218 = pneg %p144
      $region30: #{tpu_custom_call.1} parent=11 // pred_check_branch
        %220 = sbr.rel (%p218) target = $region32
      $region31: #{tpu_custom_call.1} parent=11 // pred_region
        _
      $region32: #{tpu_custom_call.1} parent=11 // pred_fallthru
        _
      // Predicated region
      $region33: #{tpu_custom_call.1} parent=11 // pred_check
        %p221 = pneg %p165
      $region34: #{tpu_custom_call.1} parent=11 // pred_check_branch
        %223 = sbr.rel (%p221) target = $region36
      $region35: #{tpu_custom_call.1} parent=11 // pred_region
        _
      $region36: #{tpu_custom_call.1} parent=11 // pred_fallthru
        _
    $region12: #{tpu_custom_call.1} parent=5 // pred_fallthru
      _
    %p224 = scmp.lt.s32.totalorder %s13, 4
    // Predicated region
    $region37: #{tpu_custom_call.1} parent=5 // pred_check
      %p225 = pneg %p224
    $region38: #{tpu_custom_call.1} parent=5 // pred_check_branch
      %227 = sbr.rel (%p225) target = $region40
    $region39: #{tpu_custom_call.1} parent=5 // pred_region
      // Predicated region
      $region41: #{tpu_custom_call.1} parent=39 // pred_check
        %p228 = pneg %p33
      $region42: #{tpu_custom_call.1} parent=39 // pred_check_branch
        %230 = sbr.rel (%p228) target = $region44
      $region43: #{tpu_custom_call.1} parent=39 // pred_region
        %s231 = smul.u32 40, %s13
        %p232 = scmp.lt.s32.totalorder %s231, 159
        %s233 = scalar_select %p232, %s231, 159
        %s234 = smul.addr %s233, 4
        %s235 = scalar_lea.vmem %s0, %s234
        %s236 = smul.u32 40, %s13
      $region44: #{tpu_custom_call.1} parent=39 // pred_fallthru
        _
    $region40: #{tpu_custom_call.1} parent=5 // pred_fallthru
      _
    %p237 = scmp.le.s32.totalorder 1, %s13
    %p238 = scmp.lt.s32.totalorder %s13, 5
    %p239 = pnand %p237, %p238
    %p240 = pneg %p239
    // Predicated region
    $region45: #{tpu_custom_call.1} parent=5 // pred_check
      _
    $region46: #{tpu_custom_call.1} parent=5 // pred_check_branch
      %242 = sbr.rel (%p239) target = $region48
    $region47: #{tpu_custom_call.1} parent=5 // pred_region
      %s243 = ssub.s32 %s13, 1
      %s244 = smul.u32 40, %s18
      %p245 = scmp.lt.s32.totalorder %s244, 159
      %s246 = scalar_select %p245, %s244, 159
      %s247 = smul.addr %s246, 4
      %s248 = scalar_lea.vmem %s0, %s247
      %p249 = pneg %p39
      %p250 = pneg %p36
      %p251 = pneg %p60
      %p252 = pneg %p57
      %p253 = pneg %p81
      %p254 = pneg %p78
      %p255 = pneg %p102
      %p256 = pneg %p99
      %p257 = pneg %p123
      %p258 = pneg %p120
      %p259 = pneg %p144
      %p260 = pneg %p141
      %p261 = pneg %p165
      %p262 = pneg %p162
      %p263 = pneg %p191
      %p264 = pneg %p188
      %p265 = scmp.lt.s32.totalorder %s18, 3
      %s266 = scalar_select %p265, %s18, 3
      %s267 = smul.addr %s266, 3
      %s268 = smul.addr %s267, 8
      %s269 = scalar_lea.vmem %s7, %s268
      %s270 = smul.u32 40, %s18
      %p271 = scmp.lt.s32.totalorder %s270, 159
      %s272 = scalar_select %p271, %s270, 159
      %s273 = smul.addr %s272, 4
      %s274 = scalar_lea.vmem %s0, %s273
      %s275 = smul.u32 40, %s18
      %p276 = scmp.lt.s32.totalorder %s18, 3
      %s277 = scalar_select %p276, %s18, 3
      %s278 = smul.addr %s277, 3
      %s279 = smul.addr %s278, 8
      %s280 = scalar_lea.vmem %s7, %s279
      %v282 = vld [vmem:[%s274] sm:$0xf]
      %v283 = vld [vmem:[%s274 + $0x4] sm:$0xf]
      %v284 = vld [vmem:[%s274 + $0x8] sm:$0xf]
      %v285 = vld [vmem:[%s274 + $0xc] sm:$0xf]
      %v286 = vld [vmem:[%s274 + $0x10] sm:$0xf]
      %v287 = vld [vmem:[%s274 + $0x14] sm:$0xf]
      %v288 = vld [vmem:[%s274 + $0x18] sm:$0xf]
      %v289 = vld [vmem:[%s274 + $0x1c] sm:$0xf]
      %v290 = vld [vmem:[%s274 + $0x20] sm:$0xf]
      %v291 = vld [vmem:[%s274 + $0x24] sm:$0xf]
      %v292 = vld [vmem:[%s274 + $0x28] sm:$0xf]
      %v293 = vld [vmem:[%s274 + $0x2c] sm:$0xf]
      %v294 = vld [vmem:[%s274 + $0x30] sm:$0xf]
      %v295 = vld [vmem:[%s274 + $0x34] sm:$0xf]
      %v296 = vld [vmem:[%s274 + $0x38] sm:$0xf]
      %v297 = vld [vmem:[%s274 + $0x3c] sm:$0xf]
      %v298 = vld [vmem:[%s274 + $0x40] sm:$0xf]
      %v299 = vld [vmem:[%s274 + $0x44] sm:$0xf]
      %v300 = vld [vmem:[%s274 + $0x48] sm:$0xf]
      %v301 = vld [vmem:[%s274 + $0x4c] sm:$0xf]
      %v302 = vld [vmem:[%s274 + $0x50] sm:$0xf]
      %v303 = vld [vmem:[%s274 + $0x54] sm:$0xf]
      %v304 = vld [vmem:[%s274 + $0x58] sm:$0xf]
      %v305 = vld [vmem:[%s274 + $0x5c] sm:$0xf]
      %v306 = vld [vmem:[%s274 + $0x60] sm:$0xf]
      %v307 = vld [vmem:[%s274 + $0x64] sm:$0xf]
      %v308 = vld [vmem:[%s274 + $0x68] sm:$0xf]
      %v309 = vld [vmem:[%s274 + $0x6c] sm:$0xf]
      %v310 = vld [vmem:[%s274 + $0x70] sm:$0xf]
      %v311 = vld [vmem:[%s274 + $0x74] sm:$0xf]
      %v312 = vld [vmem:[%s274 + $0x78] sm:$0xf]
      %v313 = vld [vmem:[%s274 + $0x7c] sm:$0xf]
      %v314 = vld [vmem:[%s274 + $0x80] sm:$0xf]
      %v315 = vld [vmem:[%s274 + $0x84] sm:$0xf]
      %v316 = vld [vmem:[%s274 + $0x88] sm:$0xf]
      %v317 = vld [vmem:[%s274 + $0x8c] sm:$0xf]
      %v318 = vld [vmem:[%s274 + $0x90] sm:$0xf]
      %v319 = vld [vmem:[%s274 + $0x94] sm:$0xf]
      %v320 = vld [vmem:[%s274 + $0x98] sm:$0xf]
      %v321 = vld [vmem:[%s274 + $0x9c] sm:$0xf]
      %v322 = vld [vmem:[%s1] sm:$0xf]
      %v323 = vld [vmem:[%s2] sm:$0x1]
      %v325 = vlaneseq
      %v326 = vshrl.u32 %v325, 7
      %v327 = vsub.s32 0, %v326
      %v328 = vrot.slane %v323, %v327
      %v370 = vunpack.c.l.b16 %v282
      %v371 = vunpack.c.l.b16 %v283
      %v372 = vunpack.c.l.b16 %v284
      %v373 = vunpack.c.l.b16 %v285
      %v374 = vunpack.c.l.b16 %v286
      %v375 = vunpack.c.l.b16 %v287
      %v376 = vunpack.c.l.b16 %v288
      %v377 = vunpack.c.l.b16 %v289
      %v378 = vunpack.c.l.b16 %v290
      %v379 = vunpack.c.l.b16 %v291
      %v380 = vunpack.c.l.b16 %v292
      %v381 = vunpack.c.l.b16 %v293
      %v382 = vunpack.c.l.b16 %v294
      %v383 = vunpack.c.l.b16 %v295
      %v384 = vunpack.c.l.b16 %v296
      %v385 = vunpack.c.l.b16 %v297
      %v386 = vunpack.c.l.b16 %v298
      %v387 = vunpack.c.l.b16 %v299
      %v388 = vunpack.c.l.b16 %v300
      %v389 = vunpack.c.l.b16 %v301
      %v390 = vunpack.c.l.b16 %v302
      %v391 = vunpack.c.l.b16 %v303
      %v392 = vunpack.c.l.b16 %v304
      %v393 = vunpack.c.l.b16 %v305
      %v394 = vunpack.c.l.b16 %v306
      %v395 = vunpack.c.l.b16 %v307
      %v396 = vunpack.c.l.b16 %v308
      %v397 = vunpack.c.l.b16 %v309
      %v398 = vunpack.c.l.b16 %v310
      %v399 = vunpack.c.l.b16 %v311
      %v400 = vunpack.c.l.b16 %v312
      %v401 = vunpack.c.l.b16 %v313
      %v402 = vunpack.c.l.b16 %v314
      %v403 = vunpack.c.l.b16 %v315
      %v404 = vunpack.c.l.b16 %v316
      %v405 = vunpack.c.l.b16 %v317
      %v406 = vunpack.c.l.b16 %v318
      %v407 = vunpack.c.l.b16 %v319
      %v408 = vunpack.c.l.b16 %v320
      %v409 = vunpack.c.l.b16 %v321
      %v410 = vpack.c.b16 %v371, %v370
      %v411 = vpack.c.b16 %v373, %v372
      %v412 = vpack.c.b16 %v375, %v374
      %v413 = vpack.c.b16 %v377, %v376
      %v414 = vpack.c.b16 %v379, %v378
      %v415 = vpack.c.b16 %v381, %v380
      %v416 = vpack.c.b16 %v383, %v382
      %v417 = vpack.c.b16 %v385, %v384
      %v418 = vpack.c.b16 %v387, %v386
      %v419 = vpack.c.b16 %v389, %v388
      %v420 = vpack.c.b16 %v391, %v390
      %v421 = vpack.c.b16 %v393, %v392
      %v422 = vpack.c.b16 %v395, %v394
      %v423 = vpack.c.b16 %v397, %v396
      %v424 = vpack.c.b16 %v399, %v398
      %v425 = vpack.c.b16 %v401, %v400
      %v426 = vpack.c.b16 %v403, %v402
      %v427 = vpack.c.b16 %v405, %v404
      %v428 = vpack.c.b16 %v407, %v406
      %v429 = vpack.c.b16 %v409, %v408
      %vm430 = vcmask 64512
      %v432 = vsel %vm430, %v410, 0
      %v435 = vsel %vm430, %v411, 0
      %v438 = vsel %vm430, %v412, 0
      %v441 = vsel %vm430, %v413, 0
      %v444 = vsel %vm430, %v414, 0
      %v447 = vsel %vm430, %v415, 0
      %v450 = vsel %vm430, %v416, 0
      %v453 = vsel %vm430, %v417, 0
      %v456 = vsel %vm430, %v418, 0
      %v459 = vsel %vm430, %v419, 0
      %v462 = vsel %vm430, %v420, 0
      %v465 = vsel %vm430, %v421, 0
      %v468 = vsel %vm430, %v422, 0
      %v471 = vsel %vm430, %v423, 0
      %v474 = vsel %vm430, %v424, 0
      %v477 = vsel %vm430, %v425, 0
      %v480 = vsel %vm430, %v426, 0
      %v483 = vsel %vm430, %v427, 0
      %v486 = vsel %vm430, %v428, 0
      %v489 = vsel %vm430, %v429, 0
      %vm491 = vcmask 1043456
      %v493 = vsel %vm491, %v322, 0
      %495 = vmatprep.subr.bf16.mxu0 0
      %496 = vmatpush1.bf16.msra.mxu0 0
      %497 = vmatprep.subr.bf16.mxu0 0
      %498 = vmatpush1.bf16.msra.mxu0 0
      %499 = vmatprep.subr.bf16.mxu0 0
      %500 = vmatpush1.bf16.msra.mxu0 0
      %501 = vmatprep.subr.bf16.mxu0 0
      %502 = vmatpush1.bf16.msra.mxu0 0
      %503 = vmatprep.subr.bf16.mxu0 0
      %504 = vmatpush1.bf16.msra.mxu0 0
      %505 = vmatprep.subr.bf16.mxu0 0
      %506 = vmatpush1.bf16.msra.mxu0 0
      %507 = vmatprep.subr.bf16.mxu0 0
      %508 = vmatpush1.bf16.msra.mxu0 0
      %509 = vmatprep.subr.bf16.mxu0 0
      %510 = vmatpush1.bf16.msra.mxu0 %v493
      %511 = vmatprep.subr.bf16.mxu0 0
      %512 = vmatpush2.bf16.msra.mxu0 0
      %513 = vmatprep.subr.bf16.mxu0 0
      %514 = vmatpush2.bf16.msra.mxu0 0
      %515 = vmatprep.subr.bf16.mxu0 0
      %516 = vmatpush2.bf16.msra.mxu0 0
      %517 = vmatprep.subr.bf16.mxu0 0
      %518 = vmatpush2.bf16.msra.mxu0 0
      %519 = vmatprep.subr.bf16.mxu0 0
      %520 = vmatpush2.bf16.msra.mxu0 0
      %521 = vmatprep.subr.bf16.mxu0 0
      %522 = vmatpush2.bf16.msra.mxu0 0
      %523 = vmatprep.subr.bf16.mxu0 0
      %524 = vmatpush2.bf16.msra.mxu0 0
      %525 = vmatprep.subr.bf16.mxu0 0
      %526 = vmatpush2.bf16.msra.mxu0 0
      %527 = vmatprep.mubr.bf16.mxu0 0
      %528 = vmatmul.mubr.bf16.gmra.mxu0 %v432
      %v529 = vpop.f32.mrf.mxu0
      %v530 = vadd.f32 %v328, %v529
      %v531 = vpop.f32.mrf.mxu0
      %v532 = vpop.f32.mrf.mxu0
      %v533 = vadd.f32 %v328, %v532
      %v534 = vpop.f32.mrf.mxu0
      %535 = vmatprep.mubr.bf16.mxu0 0
      %536 = vmatmul.mubr.bf16.gmra.mxu0 %v435
      %v537 = vpop.f32.mrf.mxu0
      %v538 = vadd.f32 %v328, %v537
      %v539 = vpop.f32.mrf.mxu0
      %v540 = vpop.f32.mrf.mxu0
      %v541 = vadd.f32 %v328, %v540
      %v542 = vpop.f32.mrf.mxu0
      %543 = vmatprep.mubr.bf16.mxu0 0
      %544 = vmatmul.mubr.bf16.gmra.mxu0 %v438
      %v545 = vpop.f32.mrf.mxu0
      %v546 = vadd.f32 %v328, %v545
      %v547 = vpop.f32.mrf.mxu0
      %v548 = vpop.f32.mrf.mxu0
      %v549 = vadd.f32 %v328, %v548
      %v550 = vpop.f32.mrf.mxu0
      %551 = vmatprep.mubr.bf16.mxu0 0
      %552 = vmatmul.mubr.bf16.gmra.mxu0 %v441
      %v553 = vpop.f32.mrf.mxu0
      %v554 = vadd.f32 %v328, %v553
      %v555 = vpop.f32.mrf.mxu0
      %v556 = vpop.f32.mrf.mxu0
      %v557 = vadd.f32 %v328, %v556
      %v558 = vpop.f32.mrf.mxu0
      %559 = vmatprep.mubr.bf16.mxu0 0
      %560 = vmatmul.mubr.bf16.gmra.mxu0 %v444
      %v561 = vpop.f32.mrf.mxu0
      %v562 = vadd.f32 %v328, %v561
      %v563 = vpop.f32.mrf.mxu0
      %v564 = vpop.f32.mrf.mxu0
      %v565 = vadd.f32 %v328, %v564
      %v566 = vpop.f32.mrf.mxu0
      %567 = vmatprep.mubr.bf16.mxu0 0
      %568 = vmatmul.mubr.bf16.gmra.mxu0 %v447
      %v569 = vpop.f32.mrf.mxu0
      %v570 = vadd.f32 %v328, %v569
      %v571 = vpop.f32.mrf.mxu0
      %v572 = vpop.f32.mrf.mxu0
      %v573 = vadd.f32 %v328, %v572
      %v574 = vpop.f32.mrf.mxu0
      %575 = vmatprep.mubr.bf16.mxu0 0
      %576 = vmatmul.mubr.bf16.gmra.mxu0 %v450
      %v577 = vpop.f32.mrf.mxu0
      %v578 = vadd.f32 %v328, %v577
      %v579 = vpop.f32.mrf.mxu0
      %v580 = vpop.f32.mrf.mxu0
      %v581 = vadd.f32 %v328, %v580
      %v582 = vpop.f32.mrf.mxu0
      %583 = vmatprep.mubr.bf16.mxu0 0
      %584 = vmatmul.mubr.bf16.gmra.mxu0 %v453
      %v585 = vpop.f32.mrf.mxu0
      %v586 = vadd.f32 %v328, %v585
      %v587 = vpop.f32.mrf.mxu0
      %v588 = vpop.f32.mrf.mxu0
      %v589 = vadd.f32 %v328, %v588
      %v590 = vpop.f32.mrf.mxu0
      %591 = vmatprep.mubr.bf16.mxu0 0
      %592 = vmatmul.mubr.bf16.gmra.mxu0 %v456
      %v593 = vpop.f32.mrf.mxu0
      %v594 = vadd.f32 %v328, %v593
      %v595 = vpop.f32.mrf.mxu0
      %v596 = vpop.f32.mrf.mxu0
      %v597 = vadd.f32 %v328, %v596
      %v598 = vpop.f32.mrf.mxu0
      %599 = vmatprep.mubr.bf16.mxu0 0
      %600 = vmatmul.mubr.bf16.gmra.mxu0 %v459
      %v601 = vpop.f32.mrf.mxu0
      %v602 = vadd.f32 %v328, %v601
      %v603 = vpop.f32.mrf.mxu0
      %v604 = vpop.f32.mrf.mxu0
      %v605 = vadd.f32 %v328, %v604
      %v606 = vpop.f32.mrf.mxu0
      %607 = vmatprep.mubr.bf16.mxu0 0
      %608 = vmatmul.mubr.bf16.gmra.mxu0 %v462
      %v609 = vpop.f32.mrf.mxu0
      %v610 = vadd.f32 %v328, %v609
      %v611 = vpop.f32.mrf.mxu0
      %v612 = vpop.f32.mrf.mxu0
      %v613 = vadd.f32 %v328, %v612
      %v614 = vpop.f32.mrf.mxu0
      %615 = vmatprep.mubr.bf16.mxu0 0
      %616 = vmatmul.mubr.bf16.gmra.mxu0 %v465
      %v617 = vpop.f32.mrf.mxu0
      %v618 = vadd.f32 %v328, %v617
      %v619 = vpop.f32.mrf.mxu0
      %v620 = vpop.f32.mrf.mxu0
      %v621 = vadd.f32 %v328, %v620
      %v622 = vpop.f32.mrf.mxu0
      %623 = vmatprep.mubr.bf16.mxu0 0
      %624 = vmatmul.mubr.bf16.gmra.mxu0 %v468
      %v625 = vpop.f32.mrf.mxu0
      %v626 = vadd.f32 %v328, %v625
      %v627 = vpop.f32.mrf.mxu0
      %v628 = vpop.f32.mrf.mxu0
      %v629 = vadd.f32 %v328, %v628
      %v630 = vpop.f32.mrf.mxu0
      %631 = vmatprep.mubr.bf16.mxu0 0
      %632 = vmatmul.mubr.bf16.gmra.mxu0 %v471
      %v633 = vpop.f32.mrf.mxu0
      %v634 = vadd.f32 %v328, %v633
      %v635 = vpop.f32.mrf.mxu0
      %v636 = vpop.f32.mrf.mxu0
      %v637 = vadd.f32 %v328, %v636
      %v638 = vpop.f32.mrf.mxu0
      %639 = vmatprep.mubr.bf16.mxu0 0
      %640 = vmatmul.mubr.bf16.gmra.mxu0 %v474
      %v641 = vpop.f32.mrf.mxu0
      %v642 = vadd.f32 %v328, %v641
      %v643 = vpop.f32.mrf.mxu0
      %v644 = vpop.f32.mrf.mxu0
      %v645 = vadd.f32 %v328, %v644
      %v646 = vpop.f32.mrf.mxu0
      %647 = vmatprep.mubr.bf16.mxu0 0
      %648 = vmatmul.mubr.bf16.gmra.mxu0 %v477
      %v649 = vpop.f32.mrf.mxu0
      %v650 = vadd.f32 %v328, %v649
      %v651 = vpop.f32.mrf.mxu0
      %v652 = vpop.f32.mrf.mxu0
      %v653 = vadd.f32 %v328, %v652
      %v654 = vpop.f32.mrf.mxu0
      %655 = vmatprep.mubr.bf16.mxu0 0
      %656 = vmatmul.mubr.bf16.gmra.mxu0 %v480
      %v657 = vpop.f32.mrf.mxu0
      %v658 = vadd.f32 %v328, %v657
      %v659 = vpop.f32.mrf.mxu0
      %v660 = vpop.f32.mrf.mxu0
      %v661 = vadd.f32 %v328, %v660
      %v662 = vpop.f32.mrf.mxu0
      %663 = vmatprep.mubr.bf16.mxu0 0
      %664 = vmatmul.mubr.bf16.gmra.mxu0 %v483
      %v665 = vpop.f32.mrf.mxu0
      %v666 = vadd.f32 %v328, %v665
      %v667 = vpop.f32.mrf.mxu0
      %v668 = vpop.f32.mrf.mxu0
      %v669 = vadd.f32 %v328, %v668
      %v670 = vpop.f32.mrf.mxu0
      %671 = vmatprep.mubr.bf16.mxu0 0
      %672 = vmatmul.mubr.bf16.gmra.mxu0 %v486
      %v673 = vpop.f32.mrf.mxu0
      %v674 = vadd.f32 %v328, %v673
      %v675 = vpop.f32.mrf.mxu0
      %v676 = vpop.f32.mrf.mxu0
      %v677 = vadd.f32 %v328, %v676
      %v678 = vpop.f32.mrf.mxu0
      %679 = vmatprep.mubr.bf16.mxu0 0
      %680 = vmatmul.mubr.bf16.gmra.mxu0 %v489
      %v681 = vpop.f32.mrf.mxu0
      %v682 = vadd.f32 %v328, %v681
      %v683 = vpop.f32.mrf.mxu0
      %v684 = vpop.f32.mrf.mxu0
      %v685 = vadd.f32 %v328, %v684
      %v686 = vpop.f32.mrf.mxu0
      %687 = vdwg.mxu0
      %v688 = vmax.f32 %v530, 0.0
      %v689 = vmax.f32 %v533, 0.0
      %v690 = vmax.f32 %v538, 0.0
      %v691 = vmax.f32 %v541, 0.0
      %v692 = vmax.f32 %v546, 0.0
      %v693 = vmax.f32 %v549, 0.0
      %v694 = vmax.f32 %v554, 0.0
      %v695 = vmax.f32 %v557, 0.0
      %v696 = vmax.f32 %v562, 0.0
      %v697 = vmax.f32 %v565, 0.0
      %v698 = vmax.f32 %v570, 0.0
      %v699 = vmax.f32 %v573, 0.0
      %v700 = vmax.f32 %v578, 0.0
      %v701 = vmax.f32 %v581, 0.0
      %v702 = vmax.f32 %v586, 0.0
      %v703 = vmax.f32 %v589, 0.0
      %v704 = vmax.f32 %v594, 0.0
      %v705 = vmax.f32 %v597, 0.0
      %v706 = vmax.f32 %v602, 0.0
      %v707 = vmax.f32 %v605, 0.0
      %v708 = vmax.f32 %v610, 0.0
      %v709 = vmax.f32 %v613, 0.0
      %v710 = vmax.f32 %v618, 0.0
      %v711 = vmax.f32 %v621, 0.0
      %v712 = vmax.f32 %v626, 0.0
      %v713 = vmax.f32 %v629, 0.0
      %v714 = vmax.f32 %v634, 0.0
      %v715 = vmax.f32 %v637, 0.0
      %v716 = vmax.f32 %v642, 0.0
      %v717 = vmax.f32 %v645, 0.0
      %v718 = vmax.f32 %v650, 0.0
      %v719 = vmax.f32 %v653, 0.0
      %v720 = vmax.f32 %v658, 0.0
      %v721 = vmax.f32 %v661, 0.0
      %v722 = vmax.f32 %v666, 0.0
      %v723 = vmax.f32 %v669, 0.0
      %v724 = vmax.f32 %v674, 0.0
      %v725 = vmax.f32 %v677, 0.0
      %v726 = vmax.f32 %v682, 0.0
      %v727 = vmax.f32 %v685, 0.0
      %v728 = vpack.c.bf16 %v689, %v688
      %v729 = vpack.c.bf16 %v691, %v690
      %v730 = vpack.c.bf16 %v693, %v692
      %v731 = vpack.c.bf16 %v695, %v694
      %v732 = vpack.c.bf16 %v697, %v696
      %v733 = vpack.c.bf16 %v699, %v698
      %v734 = vpack.c.bf16 %v701, %v700
      %v735 = vpack.c.bf16 %v703, %v702
      %v736 = vpack.c.bf16 %v705, %v704
      %v737 = vpack.c.bf16 %v707, %v706
      %v738 = vpack.c.bf16 %v709, %v708
      %v739 = vpack.c.bf16 %v711, %v710
      %v740 = vpack.c.bf16 %v713, %v712
      %v741 = vpack.c.bf16 %v715, %v714
      %v742 = vpack.c.bf16 %v717, %v716
      %v743 = vpack.c.bf16 %v719, %v718
      %v744 = vpack.c.bf16 %v721, %v720
      %v745 = vpack.c.bf16 %v723, %v722
      %v746 = vpack.c.bf16 %v725, %v724
      %v747 = vpack.c.bf16 %v727, %v726
      %v748 = vld [vmem:[%s3] sm:$0xf]
      %v749 = vld [vmem:[%s3 + $0x4] sm:$0xf]
      %v750 = vld [vmem:[%s3 + $0x8] sm:$0xf]
      %v751 = vld [vmem:[%s3 + $0xc] sm:$0xf]
      %v752 = vld [vmem:[%s3 + $0x10] sm:$0xf]
      %v753 = vld [vmem:[%s3 + $0x14] sm:$0xf]
      %v754 = vld [vmem:[%s3 + $0x18] sm:$0xf]
      %v755 = vld [vmem:[%s3 + $0x1c] sm:$0xf]
      %v756 = vld [vmem:[%s4] sm:$0x1]
      %v758 = vlaneseq
      %v759 = vshrl.u32 %v758, 7
      %v760 = vsub.s32 0, %v759
      %v761 = vrot.slane %v756, %v760
      %v771 = vunpack.c.l.b16 %v748
      %v772 = vunpack.c.l.b16 %v749
      %v773 = vunpack.c.l.b16 %v750
      %v774 = vunpack.c.l.b16 %v751
      %v775 = vunpack.c.l.b16 %v752
      %v776 = vunpack.c.l.b16 %v753
      %v777 = vunpack.c.l.b16 %v754
      %v778 = vunpack.c.l.b16 %v755
      %v779 = vpack.c.b16 %v772, %v771
      %v780 = vpack.c.b16 %v774, %v773
      %v781 = vpack.c.b16 %v776, %v775
      %v782 = vpack.c.b16 %v778, %v777
      %vm787 = vcmask 523264
      %v789 = vsel %vm787, %v728, 0
      %v792 = vsel %vm787, %v729, 0
      %v795 = vsel %vm787, %v730, 0
      %v798 = vsel %vm787, %v731, 0
      %v801 = vsel %vm787, %v732, 0
      %v804 = vsel %vm787, %v733, 0
      %v807 = vsel %vm787, %v734, 0
      %v810 = vsel %vm787, %v735, 0
      %v813 = vsel %vm787, %v736, 0
      %v816 = vsel %vm787, %v737, 0
      %v819 = vsel %vm787, %v738, 0
      %v822 = vsel %vm787, %v739, 0
      %v825 = vsel %vm787, %v740, 0
      %v828 = vsel %vm787, %v741, 0
      %v831 = vsel %vm787, %v742, 0
      %v834 = vsel %vm787, %v743, 0
      %v837 = vsel %vm787, %v744, 0
      %v840 = vsel %vm787, %v745, 0
      %v843 = vsel %vm787, %v746, 0
      %v846 = vsel %vm787, %v747, 0
      %848 = vmatprep.subr.bf16.mxu0 0
      %849 = vmatpush1.bf16.msra.mxu0 0
      %850 = vmatprep.subr.bf16.mxu0 0
      %851 = vmatpush1.bf16.msra.mxu0 0
      %852 = vmatprep.subr.bf16.mxu0 0
      %853 = vmatpush1.bf16.msra.mxu0 0
      %854 = vmatprep.subr.bf16.mxu0 0
      %855 = vmatpush1.bf16.msra.mxu0 0
      %856 = vmatprep.subr.bf16.mxu0 0
      %857 = vmatpush1.bf16.msra.mxu0 %v782
      %858 = vmatprep.subr.bf16.mxu0 0
      %859 = vmatpush1.bf16.msra.mxu0 %v781
      %860 = vmatprep.subr.bf16.mxu0 0
      %861 = vmatpush1.bf16.msra.mxu0 %v780
      %862 = vmatprep.subr.bf16.mxu0 0
      %863 = vmatpush1.bf16.msra.mxu0 %v779
      %864 = vmatprep.subr.bf16.mxu0 0
      %865 = vmatpush2.bf16.msra.mxu0 0
      %866 = vmatprep.subr.bf16.mxu0 0
      %867 = vmatpush2.bf16.msra.mxu0 0
      %868 = vmatprep.subr.bf16.mxu0 0
      %869 = vmatpush2.bf16.msra.mxu0 0
      %870 = vmatprep.subr.bf16.mxu0 0
      %871 = vmatpush2.bf16.msra.mxu0 0
      %872 = vmatprep.subr.bf16.mxu0 0
      %873 = vmatpush2.bf16.msra.mxu0 0
      %874 = vmatprep.subr.bf16.mxu0 0
      %875 = vmatpush2.bf16.msra.mxu0 0
      %876 = vmatprep.subr.bf16.mxu0 0
      %877 = vmatpush2.bf16.msra.mxu0 0
      %878 = vmatprep.subr.bf16.mxu0 0
      %879 = vmatpush2.bf16.msra.mxu0 0
      %880 = vmatprep.mubr.bf16.mxu0 0
      %881 = vmatmul.mubr.bf16.gmra.mxu0 %v789
      %v882 = vpop.f32.mrf.mxu0
      %v883 = vadd.f32 %v761, %v882
      %v884 = vpop.f32.mrf.mxu0
      %v885 = vpop.f32.mrf.mxu0
      %v886 = vadd.f32 %v761, %v885
      %v887 = vpop.f32.mrf.mxu0
      %888 = vmatprep.mubr.bf16.mxu0 0
      %889 = vmatmul.mubr.bf16.gmra.mxu0 %v792
      %v890 = vpop.f32.mrf.mxu0
      %v891 = vadd.f32 %v761, %v890
      %v892 = vpop.f32.mrf.mxu0
      %v893 = vpop.f32.mrf.mxu0
      %v894 = vadd.f32 %v761, %v893
      %v895 = vpop.f32.mrf.mxu0
      %896 = vmatprep.mubr.bf16.mxu0 0
      %897 = vmatmul.mubr.bf16.gmra.mxu0 %v795
      %v898 = vpop.f32.mrf.mxu0
      %v899 = vadd.f32 %v761, %v898
      %v900 = vpop.f32.mrf.mxu0
      %v901 = vpop.f32.mrf.mxu0
      %v902 = vadd.f32 %v761, %v901
      %v903 = vpop.f32.mrf.mxu0
      %904 = vmatprep.mubr.bf16.mxu0 0
      %905 = vmatmul.mubr.bf16.gmra.mxu0 %v798
      %v906 = vpop.f32.mrf.mxu0
      %v907 = vadd.f32 %v761, %v906
      %v908 = vpop.f32.mrf.mxu0
      %v909 = vpop.f32.mrf.mxu0
      %v910 = vadd.f32 %v761, %v909
      %v911 = vpop.f32.mrf.mxu0
      %912 = vmatprep.mubr.bf16.mxu0 0
      %913 = vmatmul.mubr.bf16.gmra.mxu0 %v801
      %v914 = vpop.f32.mrf.mxu0
      %v915 = vadd.f32 %v761, %v914
      %v916 = vpop.f32.mrf.mxu0
      %v917 = vpop.f32.mrf.mxu0
      %v918 = vadd.f32 %v761, %v917
      %v919 = vpop.f32.mrf.mxu0
      %920 = vmatprep.mubr.bf16.mxu0 0
      %921 = vmatmul.mubr.bf16.gmra.mxu0 %v804
      %v922 = vpop.f32.mrf.mxu0
      %v923 = vadd.f32 %v761, %v922
      %v924 = vpop.f32.mrf.mxu0
      %v925 = vpop.f32.mrf.mxu0
      %v926 = vadd.f32 %v761, %v925
      %v927 = vpop.f32.mrf.mxu0
      %928 = vmatprep.mubr.bf16.mxu0 0
      %929 = vmatmul.mubr.bf16.gmra.mxu0 %v807
      %v930 = vpop.f32.mrf.mxu0
      %v931 = vadd.f32 %v761, %v930
      %v932 = vpop.f32.mrf.mxu0
      %v933 = vpop.f32.mrf.mxu0
      %v934 = vadd.f32 %v761, %v933
      %v935 = vpop.f32.mrf.mxu0
      %936 = vmatprep.mubr.bf16.mxu0 0
      %937 = vmatmul.mubr.bf16.gmra.mxu0 %v810
      %v938 = vpop.f32.mrf.mxu0
      %v939 = vadd.f32 %v761, %v938
      %v940 = vpop.f32.mrf.mxu0
      %v941 = vpop.f32.mrf.mxu0
      %v942 = vadd.f32 %v761, %v941
      %v943 = vpop.f32.mrf.mxu0
      %944 = vmatprep.mubr.bf16.mxu0 0
      %945 = vmatmul.mubr.bf16.gmra.mxu0 %v813
      %v946 = vpop.f32.mrf.mxu0
      %v947 = vadd.f32 %v761, %v946
      %v948 = vpop.f32.mrf.mxu0
      %v949 = vpop.f32.mrf.mxu0
      %v950 = vadd.f32 %v761, %v949
      %v951 = vpop.f32.mrf.mxu0
      %952 = vmatprep.mubr.bf16.mxu0 0
      %953 = vmatmul.mubr.bf16.gmra.mxu0 %v816
      %v954 = vpop.f32.mrf.mxu0
      %v955 = vadd.f32 %v761, %v954
      %v956 = vpop.f32.mrf.mxu0
      %v957 = vpop.f32.mrf.mxu0
      %v958 = vadd.f32 %v761, %v957
      %v959 = vpop.f32.mrf.mxu0
      %960 = vmatprep.mubr.bf16.mxu0 0
      %961 = vmatmul.mubr.bf16.gmra.mxu0 %v819
      %v962 = vpop.f32.mrf.mxu0
      %v963 = vadd.f32 %v761, %v962
      %v964 = vpop.f32.mrf.mxu0
      %v965 = vpop.f32.mrf.mxu0
      %v966 = vadd.f32 %v761, %v965
      %v967 = vpop.f32.mrf.mxu0
      %968 = vmatprep.mubr.bf16.mxu0 0
      %969 = vmatmul.mubr.bf16.gmra.mxu0 %v822
      %v970 = vpop.f32.mrf.mxu0
      %v971 = vadd.f32 %v761, %v970
      %v972 = vpop.f32.mrf.mxu0
      %v973 = vpop.f32.mrf.mxu0
      %v974 = vadd.f32 %v761, %v973
      %v975 = vpop.f32.mrf.mxu0
      %976 = vmatprep.mubr.bf16.mxu0 0
      %977 = vmatmul.mubr.bf16.gmra.mxu0 %v825
      %v978 = vpop.f32.mrf.mxu0
      %v979 = vadd.f32 %v761, %v978
      %v980 = vpop.f32.mrf.mxu0
      %v981 = vpop.f32.mrf.mxu0
      %v982 = vadd.f32 %v761, %v981
      %v983 = vpop.f32.mrf.mxu0
      %984 = vmatprep.mubr.bf16.mxu0 0
      %985 = vmatmul.mubr.bf16.gmra.mxu0 %v828
      %v986 = vpop.f32.mrf.mxu0
      %v987 = vadd.f32 %v761, %v986
      %v988 = vpop.f32.mrf.mxu0
      %v989 = vpop.f32.mrf.mxu0
      %v990 = vadd.f32 %v761, %v989
      %v991 = vpop.f32.mrf.mxu0
      %992 = vmatprep.mubr.bf16.mxu0 0
      %993 = vmatmul.mubr.bf16.gmra.mxu0 %v831
      %v994 = vpop.f32.mrf.mxu0
      %v995 = vadd.f32 %v761, %v994
      %v996 = vpop.f32.mrf.mxu0
      %v997 = vpop.f32.mrf.mxu0
      %v998 = vadd.f32 %v761, %v997
      %v999 = vpop.f32.mrf.mxu0
      %1000 = vmatprep.mubr.bf16.mxu0 0
      %1001 = vmatmul.mubr.bf16.gmra.mxu0 %v834
      %v1002 = vpop.f32.mrf.mxu0
      %v1003 = vadd.f32 %v761, %v1002
      %v1004 = vpop.f32.mrf.mxu0
      %v1005 = vpop.f32.mrf.mxu0
      %v1006 = vadd.f32 %v761, %v1005
      %v1007 = vpop.f32.mrf.mxu0
      %1008 = vmatprep.mubr.bf16.mxu0 0
      %1009 = vmatmul.mubr.bf16.gmra.mxu0 %v837
      %v1010 = vpop.f32.mrf.mxu0
      %v1011 = vadd.f32 %v761, %v1010
      %v1012 = vpop.f32.mrf.mxu0
      %v1013 = vpop.f32.mrf.mxu0
      %v1014 = vadd.f32 %v761, %v1013
      %v1015 = vpop.f32.mrf.mxu0
      %1016 = vmatprep.mubr.bf16.mxu0 0
      %1017 = vmatmul.mubr.bf16.gmra.mxu0 %v840
      %v1018 = vpop.f32.mrf.mxu0
      %v1019 = vadd.f32 %v761, %v1018
      %v1020 = vpop.f32.mrf.mxu0
      %v1021 = vpop.f32.mrf.mxu0
      %v1022 = vadd.f32 %v761, %v1021
      %v1023 = vpop.f32.mrf.mxu0
      %1024 = vmatprep.mubr.bf16.mxu0 0
      %1025 = vmatmul.mubr.bf16.gmra.mxu0 %v843
      %v1026 = vpop.f32.mrf.mxu0
      %v1027 = vadd.f32 %v761, %v1026
      %v1028 = vpop.f32.mrf.mxu0
      %v1029 = vpop.f32.mrf.mxu0
      %v1030 = vadd.f32 %v761, %v1029
      %v1031 = vpop.f32.mrf.mxu0
      %1032 = vmatprep.mubr.bf16.mxu0 0
      %1033 = vmatmul.mubr.bf16.gmra.mxu0 %v846
      %v1034 = vpop.f32.mrf.mxu0
      %v1035 = vadd.f32 %v761, %v1034
      %v1036 = vpop.f32.mrf.mxu0
      %v1037 = vpop.f32.mrf.mxu0
      %v1038 = vadd.f32 %v761, %v1037
      %v1039 = vpop.f32.mrf.mxu0
      %1040 = vdwg.mxu0
      %v1041 = vmax.f32 %v883, 0.0
      %v1042 = vmax.f32 %v886, 0.0
      %v1043 = vmax.f32 %v891, 0.0
      %v1044 = vmax.f32 %v894, 0.0
      %v1045 = vmax.f32 %v899, 0.0
      %v1046 = vmax.f32 %v902, 0.0
      %v1047 = vmax.f32 %v907, 0.0
      %v1048 = vmax.f32 %v910, 0.0
      %v1049 = vmax.f32 %v915, 0.0
      %v1050 = vmax.f32 %v918, 0.0
      %v1051 = vmax.f32 %v923, 0.0
      %v1052 = vmax.f32 %v926, 0.0
      %v1053 = vmax.f32 %v931, 0.0
      %v1054 = vmax.f32 %v934, 0.0
      %v1055 = vmax.f32 %v939, 0.0
      %v1056 = vmax.f32 %v942, 0.0
      %v1057 = vmax.f32 %v947, 0.0
      %v1058 = vmax.f32 %v950, 0.0
      %v1059 = vmax.f32 %v955, 0.0
      %v1060 = vmax.f32 %v958, 0.0
      %v1061 = vmax.f32 %v963, 0.0
      %v1062 = vmax.f32 %v966, 0.0
      %v1063 = vmax.f32 %v971, 0.0
      %v1064 = vmax.f32 %v974, 0.0
      %v1065 = vmax.f32 %v979, 0.0
      %v1066 = vmax.f32 %v982, 0.0
      %v1067 = vmax.f32 %v987, 0.0
      %v1068 = vmax.f32 %v990, 0.0
      %v1069 = vmax.f32 %v995, 0.0
      %v1070 = vmax.f32 %v998, 0.0
      %v1071 = vmax.f32 %v1003, 0.0
      %v1072 = vmax.f32 %v1006, 0.0
      %v1073 = vmax.f32 %v1011, 0.0
      %v1074 = vmax.f32 %v1014, 0.0
      %v1075 = vmax.f32 %v1019, 0.0
      %v1076 = vmax.f32 %v1022, 0.0
      %v1077 = vmax.f32 %v1027, 0.0
      %v1078 = vmax.f32 %v1030, 0.0
      %v1079 = vmax.f32 %v1035, 0.0
      %v1080 = vmax.f32 %v1038, 0.0
      %v1081 = vmax.f32 %v1041, %v1042
      %v1082 = vmax.f32 %v1081, %v1043
      %v1083 = vmax.f32 %v1082, %v1044
      %v1084 = vmax.f32 %v1083, %v1045
      %v1085 = vmax.f32 %v1084, %v1046
      %v1086 = vmax.f32 %v1085, %v1047
      %v1087 = vmax.f32 %v1086, %v1048
      %v1088 = vrot.slane %v1087, 4
      %v1089 = vmax.f32 %v1087, %v1088
      %v1090 = vrot.slane %v1089, 2
      %v1091 = vmax.f32 %v1089, %v1090
      %v1092 = vrot.slane %v1091, 1
      %v1093 = vmax.f32 %v1091, %v1092
      %v1094 = vmax.f32 %v1049, %v1050
      %v1095 = vmax.f32 %v1094, %v1051
      %v1096 = vmax.f32 %v1095, %v1052
      %v1097 = vmax.f32 %v1096, %v1053
      %v1098 = vmax.f32 %v1097, %v1054
      %v1099 = vmax.f32 %v1098, %v1055
      %v1100 = vmax.f32 %v1099, %v1056
      %v1101 = vrot.slane %v1100, 4
      %v1102 = vmax.f32 %v1100, %v1101
      %v1103 = vrot.slane %v1102, 2
      %v1104 = vmax.f32 %v1102, %v1103
      %v1105 = vrot.slane %v1104, 1
      %v1106 = vmax.f32 %v1104, %v1105
      %v1107 = vmax.f32 %v1057, %v1058
      %v1108 = vmax.f32 %v1107, %v1059
      %v1109 = vmax.f32 %v1108, %v1060
      %v1110 = vmax.f32 %v1109, %v1061
      %v1111 = vmax.f32 %v1110, %v1062
      %v1112 = vmax.f32 %v1111, %v1063
      %v1113 = vmax.f32 %v1112, %v1064
      %v1114 = vrot.slane %v1113, 4
      %v1115 = vmax.f32 %v1113, %v1114
      %v1116 = vrot.slane %v1115, 2
      %v1117 = vmax.f32 %v1115, %v1116
      %v1118 = vrot.slane %v1117, 1
      %v1119 = vmax.f32 %v1117, %v1118
      %v1120 = vmax.f32 %v1065, %v1066
      %v1121 = vmax.f32 %v1120, %v1067
      %v1122 = vmax.f32 %v1121, %v1068
      %v1123 = vmax.f32 %v1122, %v1069
      %v1124 = vmax.f32 %v1123, %v1070
      %v1125 = vmax.f32 %v1124, %v1071
      %v1126 = vmax.f32 %v1125, %v1072
      %v1127 = vrot.slane %v1126, 4
      %v1128 = vmax.f32 %v1126, %v1127
      %v1129 = vrot.slane %v1128, 2
      %v1130 = vmax.f32 %v1128, %v1129
      %v1131 = vrot.slane %v1130, 1
      %v1132 = vmax.f32 %v1130, %v1131
      %v1133 = vmax.f32 %v1073, %v1074
      %v1134 = vmax.f32 %v1133, %v1075
      %v1135 = vmax.f32 %v1134, %v1076
      %v1136 = vmax.f32 %v1135, %v1077
      %v1137 = vmax.f32 %v1136, %v1078
      %v1138 = vmax.f32 %v1137, %v1079
      %v1139 = vmax.f32 %v1138, %v1080
      %v1140 = vrot.slane %v1139, 4
      %v1141 = vmax.f32 %v1139, %v1140
      %v1142 = vrot.slane %v1141, 2
      %v1143 = vmax.f32 %v1141, %v1142
      %v1144 = vrot.slane %v1143, 1
      %v1145 = vmax.f32 %v1143, %v1144
      %v1146 = vpack.c.bf16 %v1093, %v1093
      %v1147 = vpack.c.bf16 %v1106, %v1106
      %v1148 = vpack.c.bf16 %v1119, %v1119
      %v1149 = vpack.c.bf16 %v1132, %v1132
      %v1150 = vpack.c.bf16 %v1145, %v1145
      %v1151 = vld [vmem:[%s5] sm:$0xff]
      %v1152 = vld [vmem:[%s5 + $0x8] sm:$0xf]
      %v1153 = vld [vmem:[%s5 + $0xc] sm:$0xff]
      %v1154 = vld [vmem:[%s5 + $0x14] sm:$0xf]
      %v1155 = vld [vmem:[%s5 + $0x18] sm:$0xff]
      %v1156 = vld [vmem:[%s5 + $0x20] sm:$0xf]
      %v1157 = vld [vmem:[%s5 + $0x24] sm:$0xff]
      %v1158 = vld [vmem:[%s5 + $0x2c] sm:$0xf]
      %v1159 = vld [vmem:[%s5 + $0x30] sm:$0xff]
      %v1160 = vld [vmem:[%s5 + $0x38] sm:$0xf]
      %v1161 = vld [vmem:[%s5 + $0x3c] sm:$0xff]
      %v1162 = vld [vmem:[%s5 + $0x44] sm:$0xf]
      %v1163 = vld [vmem:[%s5 + $0x48] sm:$0xff]
      %v1164 = vld [vmem:[%s5 + $0x50] sm:$0xf]
      %v1165 = vld [vmem:[%s5 + $0x54] sm:$0xff]
      %v1166 = vld [vmem:[%s5 + $0x5c] sm:$0xf]
      %v1167 = vld [vmem:[%s5 + $0x60] sm:$0xff]
      %v1168 = vld [vmem:[%s5 + $0x68] sm:$0xf]
      %v1169 = vld [vmem:[%s5 + $0x6c] sm:$0xff]
      %v1170 = vld [vmem:[%s5 + $0x74] sm:$0xf]
      %v1171 = vld [vmem:[%s5 + $0x78] sm:$0xff]
      %v1172 = vld [vmem:[%s5 + $0x80] sm:$0xf]
      %v1173 = vld [vmem:[%s5 + $0x84] sm:$0xff]
      %v1174 = vld [vmem:[%s5 + $0x8c] sm:$0xf]
      %v1175 = vld [vmem:[%s5 + $0x90] sm:$0xff]
      %v1176 = vld [vmem:[%s5 + $0x98] sm:$0xf]
      %v1177 = vld [vmem:[%s5 + $0x9c] sm:$0xff]
      %v1178 = vld [vmem:[%s5 + $0xa4] sm:$0xf]
      %v1179 = vld [vmem:[%s5 + $0xa8] sm:$0xff]
      %v1180 = vld [vmem:[%s5 + $0xb0] sm:$0xf]
      %v1181 = vld [vmem:[%s5 + $0xb4] sm:$0xff]
      %v1182 = vld [vmem:[%s5 + $0xbc] sm:$0xf]
      %v1183 = vld [vmem:[%s6] sm:$0x7]
      %v1185 = vlaneseq
      %v1186 = vshrl.u32 %v1185, 7
      %v1187 = vsub.s32 0, %v1186
      %v1188 = vrot.slane %v1183, %v1187
      %v1189 = vlaneseq
      %v1190 = vshrl.u32 %v1189, 7
      %v1191 = vsub.s32 1, %v1190
      %v1192 = vrot.slane %v1183, %v1191
      %v1193 = vlaneseq
      %v1194 = vshrl.u32 %v1193, 7
      %v1195 = vsub.s32 2, %v1194
      %v1196 = vrot.slane %v1183, %v1195
      %v1205 = vunpack.c.l.b16 %v1146
      %v1206 = vunpack.c.l.b16 %v1147
      %v1207 = vunpack.c.l.b16 %v1148
      %v1208 = vunpack.c.l.b16 %v1149
      %v1209 = vunpack.c.l.b16 %v1150
      %vm1210 = vcmask 1041409
      %v1211 = vsel %vm1210, %v1206, %v1205
      %vm1212 = vcmask 1042434
      %v1213 = vsel %vm1212, %v1207, %v1211
      %vm1214 = vcmask 1043459
      %v1215 = vsel %vm1214, %v1208, %v1213
      %vm1216 = vcmask 1044484
      %v1217 = vsel %vm1216, %v1209, %v1215
      %v1218 = vpack.c.b16 %v1217, %v1217
      %v1252 = vunpack.c.l.b16 %v1151
      %v1253 = vunpack.c.h.b16 %v1151
      %v1254 = vunpack.c.l.b16 %v1152
      %v1255 = vunpack.c.l.b16 %v1153
      %v1256 = vunpack.c.h.b16 %v1153
      %v1257 = vunpack.c.l.b16 %v1154
      %v1258 = vunpack.c.l.b16 %v1155
      %v1259 = vunpack.c.h.b16 %v1155
      %v1260 = vunpack.c.l.b16 %v1156
      %v1261 = vunpack.c.l.b16 %v1157
      %v1262 = vunpack.c.h.b16 %v1157
      %v1263 = vunpack.c.l.b16 %v1158
      %v1264 = vunpack.c.l.b16 %v1159
      %v1265 = vunpack.c.h.b16 %v1159
      %v1266 = vunpack.c.l.b16 %v1160
      %v1267 = vunpack.c.l.b16 %v1161
      %v1268 = vunpack.c.h.b16 %v1161
      %v1269 = vunpack.c.l.b16 %v1162
      %v1270 = vunpack.c.l.b16 %v1163
      %v1271 = vunpack.c.h.b16 %v1163
      %v1272 = vunpack.c.l.b16 %v1164
      %v1273 = vunpack.c.l.b16 %v1165
      %v1274 = vunpack.c.h.b16 %v1165
      %v1275 = vunpack.c.l.b16 %v1166
      %v1276 = vunpack.c.l.b16 %v1167
      %v1277 = vunpack.c.h.b16 %v1167
      %v1278 = vunpack.c.l.b16 %v1168
      %v1279 = vunpack.c.l.b16 %v1169
      %v1280 = vunpack.c.h.b16 %v1169
      %v1281 = vunpack.c.l.b16 %v1170
      %v1282 = vunpack.c.l.b16 %v1171
      %v1283 = vunpack.c.h.b16 %v1171
      %v1284 = vunpack.c.l.b16 %v1172
      %v1285 = vunpack.c.l.b16 %v1173
      %v1286 = vunpack.c.h.b16 %v1173
      %v1287 = vunpack.c.l.b16 %v1174
      %v1288 = vunpack.c.l.b16 %v1175
      %v1289 = vunpack.c.h.b16 %v1175
      %v1290 = vunpack.c.l.b16 %v1176
      %v1291 = vunpack.c.l.b16 %v1177
      %v1292 = vunpack.c.h.b16 %v1177
      %v1293 = vunpack.c.l.b16 %v1178
      %v1294 = vunpack.c.l.b16 %v1179
      %v1295 = vunpack.c.h.b16 %v1179
      %v1296 = vunpack.c.l.b16 %v1180
      %v1297 = vunpack.c.l.b16 %v1181
      %v1298 = vunpack.c.h.b16 %v1181
      %v1299 = vunpack.c.l.b16 %v1182
      %v1300 = vpack.c.b16 %v1255, %v1252
      %v1301 = vpack.c.b16 %v1256, %v1253
      %v1302 = vpack.c.b16 %v1257, %v1254
      %v1303 = vpack.c.b16 %v1261, %v1258
      %v1304 = vpack.c.b16 %v1262, %v1259
      %v1305 = vpack.c.b16 %v1263, %v1260
      %v1306 = vpack.c.b16 %v1267, %v1264
      %v1307 = vpack.c.b16 %v1268, %v1265
      %v1308 = vpack.c.b16 %v1269, %v1266
      %v1309 = vpack.c.b16 %v1273, %v1270
      %v1310 = vpack.c.b16 %v1274, %v1271
      %v1311 = vpack.c.b16 %v1275, %v1272
      %v1312 = vpack.c.b16 %v1279, %v1276
      %v1313 = vpack.c.b16 %v1280, %v1277
      %v1314 = vpack.c.b16 %v1281, %v1278
      %v1315 = vpack.c.b16 %v1285, %v1282
      %v1316 = vpack.c.b16 %v1286, %v1283
      %v1317 = vpack.c.b16 %v1287, %v1284
      %v1318 = vpack.c.b16 %v1291, %v1288
      %v1319 = vpack.c.b16 %v1292, %v1289
      %v1320 = vpack.c.b16 %v1293, %v1290
      %v1321 = vpack.c.b16 %v1297, %v1294
      %v1322 = vpack.c.b16 %v1298, %v1295
      %v1323 = vpack.c.b16 %v1299, %v1296
      %1348 = vmatprep.subr.bf16.mxu0 %v1322
      %1349 = vmatpush1.bf16.msra.mxu0 %v1321
      %1350 = vmatprep.subr.bf16.mxu0 %v1319
      %1351 = vmatpush1.bf16.msra.mxu0 %v1318
      %1352 = vmatprep.subr.bf16.mxu0 %v1316
      %1353 = vmatpush1.bf16.msra.mxu0 %v1315
      %1354 = vmatprep.subr.bf16.mxu0 %v1313
      %1355 = vmatpush1.bf16.msra.mxu0 %v1312
      %1356 = vmatprep.subr.bf16.mxu0 %v1310
      %1357 = vmatpush1.bf16.msra.mxu0 %v1309
      %1358 = vmatprep.subr.bf16.mxu0 %v1307
      %1359 = vmatpush1.bf16.msra.mxu0 %v1306
      %1360 = vmatprep.subr.bf16.mxu0 %v1304
      %1361 = vmatpush1.bf16.msra.mxu0 %v1303
      %1362 = vmatprep.subr.bf16.mxu0 %v1301
      %1363 = vmatpush1.bf16.msra.mxu0 %v1300
      %1364 = vmatprep.subr.bf16.mxu0 0
      %1365 = vmatpush2.bf16.msra.mxu0 0
      %1366 = vmatprep.subr.bf16.mxu0 0
      %1367 = vmatpush2.bf16.msra.mxu0 0
      %1368 = vmatprep.subr.bf16.mxu0 0
      %1369 = vmatpush2.bf16.msra.mxu0 0
      %1370 = vmatprep.subr.bf16.mxu0 0
      %1371 = vmatpush2.bf16.msra.mxu0 0
      %1372 = vmatprep.subr.bf16.mxu0 0
      %1373 = vmatpush2.bf16.msra.mxu0 0
      %1374 = vmatprep.subr.bf16.mxu0 0
      %1375 = vmatpush2.bf16.msra.mxu0 0
      %1376 = vmatprep.subr.bf16.mxu0 0
      %1377 = vmatpush2.bf16.msra.mxu0 0
      %1378 = vmatprep.subr.bf16.mxu0 0
      %1379 = vmatpush2.bf16.msra.mxu0 0
      %1380 = vmatprep.mubr.bf16.mxu0 0
      %1381 = vmatmul.mubr.bf16.gmra.mxu0 %v1218
      %v1382 = vpop.f32.mrf.mxu0
      %v1383 = vadd.f32 %v1188, %v1382
      %v1384 = vpop.f32.mrf.mxu0
      %v1385 = vadd.f32 %v1192, %v1384
      %v1386 = vpop.f32.mrf.mxu0
      %v1387 = vpop.f32.mrf.mxu0
      %1388 = vdwg.mxu0
      %1389 = vmatprep.subr.bf16.mxu0 0
      %1390 = vmatpush1.bf16.msra.mxu0 %v1323
      %1391 = vmatprep.subr.bf16.mxu0 0
      %1392 = vmatpush1.bf16.msra.mxu0 %v1320
      %1393 = vmatprep.subr.bf16.mxu0 0
      %1394 = vmatpush1.bf16.msra.mxu0 %v1317
      %1395 = vmatprep.subr.bf16.mxu0 0
      %1396 = vmatpush1.bf16.msra.mxu0 %v1314
      %1397 = vmatprep.subr.bf16.mxu0 0
      %1398 = vmatpush1.bf16.msra.mxu0 %v1311
      %1399 = vmatprep.subr.bf16.mxu0 0
      %1400 = vmatpush1.bf16.msra.mxu0 %v1308
      %1401 = vmatprep.subr.bf16.mxu0 0
      %1402 = vmatpush1.bf16.msra.mxu0 %v1305
      %1403 = vmatprep.subr.bf16.mxu0 0
      %1404 = vmatpush1.bf16.msra.mxu0 %v1302
      %1405 = vmatprep.subr.bf16.mxu0 0
      %1406 = vmatpush2.bf16.msra.mxu0 0
      %1407 = vmatprep.subr.bf16.mxu0 0
      %1408 = vmatpush2.bf16.msra.mxu0 0
      %1409 = vmatprep.subr.bf16.mxu0 0
      %1410 = vmatpush2.bf16.msra.mxu0 0
      %1411 = vmatprep.subr.bf16.mxu0 0
      %1412 = vmatpush2.bf16.msra.mxu0 0
      %1413 = vmatprep.subr.bf16.mxu0 0
      %1414 = vmatpush2.bf16.msra.mxu0 0
      %1415 = vmatprep.subr.bf16.mxu0 0
      %1416 = vmatpush2.bf16.msra.mxu0 0
      %1417 = vmatprep.subr.bf16.mxu0 0
      %1418 = vmatpush2.bf16.msra.mxu0 0
      %1419 = vmatprep.subr.bf16.mxu0 0
      %1420 = vmatpush2.bf16.msra.mxu0 0
      %1421 = vmatprep.mubr.bf16.mxu0 0
      %1422 = vmatmul.mubr.bf16.gmra.mxu0 %v1218
      %v1423 = vpop.f32.mrf.mxu0
      %v1424 = vadd.f32 %v1196, %v1423
      %v1425 = vpop.f32.mrf.mxu0
      %v1426 = vpop.f32.mrf.mxu0
      %v1427 = vpop.f32.mrf.mxu0
      %1428 = vdwg.mxu0
      %1429 = vst [vmem:[%s280] sm:$0x1f] %v1383
      %1430 = vst [vmem:[%s280 + $0x8] sm:$0x1f] %v1385
      %vm1431 = vcmask 520192
      %1432 = vst.msk [vmem:[%s280 + $0x10] sm:$0x1f] %vm1431, %v1424
      %p1433 = scmp.lt.s32.totalorder %s18, 3
      %s1434 = scalar_select %p1433, %s18, 3
      %s1435 = smul.addr %s1434, 3
      %s1436 = smul.addr %s1435, 8
      %s1437 = scalar_lea.vmem %s7, %s1436
      // Predicated region
      $region49: #{tpu_custom_call.1} parent=47 // pred_check
        %p1438 = pneg %p188
      $region50: #{tpu_custom_call.1} parent=47 // pred_check_branch
        %1440 = sbr.rel (%p1438) target = $region52
      $region51: #{tpu_custom_call.1} parent=47 // pred_region
        _
      $region52: #{tpu_custom_call.1} parent=47 // pred_fallthru
        _
    $region48: #{tpu_custom_call.1} parent=5 // pred_fallthru
      _
    %p1441 = scmp.le.s32.totalorder 2, %s13
    // Predicated region
    $region53: #{tpu_custom_call.1} parent=5 // pred_check
      %p1442 = pneg %p1441
    $region54: #{tpu_custom_call.1} parent=5 // pred_check_branch
      %1444 = sbr.rel (%p1442) target = $region56
    $region55: #{tpu_custom_call.1} parent=5 // pred_region
      %s1445 = ssub.s32 %s13, 2
      // Predicated region
      $region57: #{tpu_custom_call.1} parent=55 // pred_check
        %p1446 = pneg %p194
      $region58: #{tpu_custom_call.1} parent=55 // pred_check_branch
        %1448 = sbr.rel (%p1446) target = $region60
      $region59: #{tpu_custom_call.1} parent=55 // pred_region
        %p1449 = scmp.lt.s32.totalorder %s19, 3
        %s1450 = scalar_select %p1449, %s19, 3
        %s1451 = smul.addr %s1450, 3
        %s1452 = smul.addr %s1451, 8
        %s1453 = scalar_lea.vmem %s7, %s1452
      $region60: #{tpu_custom_call.1} parent=55 // pred_fallthru
        _
    $region56: #{tpu_custom_call.1} parent=5 // pred_fallthru
      _
  $region6: #{tpu_custom_call.1} parent=0 // loop_footer
    %s17 = sadd.s32 1, %s13
  $region7: #{tpu_custom_call.1} parent=0 // loop_footer_branch
    %12 = sbr.rel target = $region3
  $region8: #{tpu_custom_call.1} parent=0 // loop_exit
    _

</llo_original>
